<compile_context>
chip_gen: v6e
topology: v6e:2x2x1
jax: 0.10.0
libtpu: 0.0.40
codegen_flags: <defaults>
</compile_context>

<pallas_src>
import math

import jax
import jax.numpy as jnp
from jax.experimental import pallas as pl
from jax.experimental.pallas import tpu as pltpu


_GELU_C = math.sqrt(2.0 / math.pi)


def _gelu_tanh(x):
    # Matches torch.nn.GELU(approximate='tanh'); f32 (safe on v5e, no bf16 VPU).
    return 0.5 * x * (1.0 + jnp.tanh(_GELU_C * (x + 0.044715 * x * x * x)))


# ---------- fast path: both weight matrices resident in VMEM ----------------
def _mlp_kernel_resident(x_ref, w1_ref, b1_ref, w2_ref, b2_ref, o_ref):
    # c_fc: (tm, C) @ (C, H) -> (tm, H); bf16 operands, f32 accumulation.
    pre = jnp.dot(x_ref[...], w1_ref[...], preferred_element_type=jnp.float32)
    act = _gelu_tanh(pre + b1_ref[...])
    # c_proj: (tm, H) @ (H, C) -> (tm, C)
    out = jnp.dot(act.astype(jnp.bfloat16), w2_ref[...],
                  preferred_element_type=jnp.float32)
    o_ref[...] = (out + b2_ref[...]).astype(o_ref.dtype)


# ---------- tiled path: reduction over hidden dim with an f32 accumulator ---
def _mlp_kernel_tiled(x_ref, w1_ref, b1_ref, w2_ref, b2_ref, o_ref, acc_ref):
    h = pl.program_id(1)  # hidden-dimension (reduction) tile index

    @pl.when(h == 0)
    def _():
        # Seed the accumulator with the output bias (saves a finalize add).
        acc_ref[...] = jnp.broadcast_to(b2_ref[...], acc_ref.shape)

    pre = jnp.dot(x_ref[...], w1_ref[...], preferred_element_type=jnp.float32)
    act = _gelu_tanh(pre + b1_ref[...])
    acc_ref[...] += jnp.dot(act.astype(jnp.bfloat16), w2_ref[...],
                            preferred_element_type=jnp.float32)

    @pl.when(h == pl.num_programs(1) - 1)
    def _():
        o_ref[...] = acc_ref[...].astype(o_ref.dtype)


def _largest_divisor_tile(total, desired, align):
    """Largest multiple of `align` that is <= desired and divides `total`."""
    t = max(align, (min(desired, total) // align) * align)
    while total % t != 0:
        t -= align
    return t


def _physical_vmem_bytes():
    try:
        return int(pltpu.get_tpu_info().vmem_capacity_bytes)
    except Exception:
        return 64 << 20  # conservative fallback (v7x per-TensorCore VMEM)


def mlp_forward(x, w_fc, b_fc, w_proj, b_proj, *, tm=None, th=None,
                out_dtype=None, force_tiled=False):
    """GPT MLP forward: c_proj(gelu_tanh(c_fc(x))).

    x:      (B, T, C)
    w_fc:   (C, 4C)   pre-transposed nn.Linear(C, 4C).weight
    b_fc:   (4C,)
    w_proj: (4C, C)   pre-transposed nn.Linear(4C, C).weight
    b_proj: (C,)
    """
    B, T, C = x.shape
    H = w_fc.shape[1]
    M = B * T
    assert w_fc.shape == (C, H) and w_proj.shape == (H, C)
    assert b_fc.shape == (H,) and b_proj.shape == (C,)
    assert M % 8 == 0 and C % 128 == 0 and H % 128 == 0, "tile alignment"

    out_dtype = x.dtype if out_dtype is None else out_dtype
    out_bytes = jnp.dtype(out_dtype).itemsize

    phys_vmem = _physical_vmem_bytes()
    budget = min(phys_vmem // 2, 48 << 20)  # working-set budget w/ headroom

    if tm is None:
        tm = _largest_divisor_tile(M, 256, 8)
    assert M % tm == 0 and tm % 8 == 0

    # Conservative VMEM working-set estimates (x/out/weights double-buffered).
    def est_resident(tm_):
        return (2 * tm_ * C * 2 + 2 * tm_ * C * out_bytes
                + 2 * 2 * C * H * 2              # W_fc + W_proj bf16 (x2 bufs)
                + 2 * (8 * H * 4 + 8 * C * 4)    # biases (sublane-padded)
                + tm_ * H * 4 + tm_ * C * 4)     # intermediates

    def est_tiled(tm_, th_):
        return (2 * tm_ * C * 2 + 2 * tm_ * C * out_bytes
                + 2 * 2 * C * th_ * 2 + 2 * 2 * th_ * C * 2
                + 2 * (8 * th_ * 4 + 8 * C * 4)
                + tm_ * C * 4                    # accumulator scratch
                + tm_ * th_ * 4)                 # activation intermediate

    # bf16 inputs/weights: half the DMA bytes, full-rate MXU. Biases stay f32.
    x2 = x.reshape(M, C).astype(jnp.bfloat16)
    w1 = w_fc.astype(jnp.bfloat16)
    w2 = w_proj.astype(jnp.bfloat16)
    b1 = b_fc.reshape(1, H).astype(jnp.float32)
    b2 = b_proj.reshape(1, C).astype(jnp.float32)

    cost = pl.CostEstimate(
        flops=4 * M * C * H,
        transcendentals=M * H,
        bytes_accessed=M * C * 2 + 2 * C * H * 2 + (H + C) * 4
        + M * C * out_bytes)

    use_resident = (not force_tiled) and est_resident(tm) <= budget

    if use_resident:
        est = est_resident(tm)
        grid_spec = pltpu.PrefetchScalarGridSpec(
            num_scalar_prefetch=0,
            grid=(M // tm,),
            in_specs=[
                pl.BlockSpec((tm, C), lambda i: (i, 0)),   # x row tile
                pl.BlockSpec((C, H), lambda i: (0, 0)),    # W_fc (resident)
                pl.BlockSpec((1, H), lambda i: (0, 0)),    # b_fc
                pl.BlockSpec((H, C), lambda i: (0, 0)),    # W_proj (resident)
                pl.BlockSpec((1, C), lambda i: (0, 0)),    # b_proj
            ],
            out_specs=pl.BlockSpec((tm, C), lambda i: (i, 0)),
        )
        kernel = _mlp_kernel_resident
        dims = ("parallel",)
    else:
        if th is None:
            th = _largest_divisor_tile(H, 1024, 128)
            while th > 128 and est_tiled(tm, th) > budget:
                th = _largest_divisor_tile(H, th - 128, 128)
        assert H % th == 0 and th % 128 == 0
        est = est_tiled(tm, th)
        grid_spec = pltpu.PrefetchScalarGridSpec(
            num_scalar_prefetch=0,
            grid=(M // tm, H // th),  # rows parallel, hidden reduction last
            in_specs=[
                pl.BlockSpec((tm, C), lambda i, h: (i, 0)),   # x rows
                pl.BlockSpec((C, th), lambda i, h: (0, h)),   # W_fc col-tile
                pl.BlockSpec((1, th), lambda i, h: (0, h)),   # b_fc tile
                pl.BlockSpec((th, C), lambda i, h: (h, 0)),   # W_proj row-tile
                pl.BlockSpec((1, C), lambda i, h: (0, 0)),    # b_proj
            ],
            out_specs=pl.BlockSpec((tm, C), lambda i, h: (i, 0)),
            scratch_shapes=[pltpu.VMEM((tm, C), jnp.float32)],
        )
        kernel = _mlp_kernel_tiled
        dims = ("parallel", "arbitrary")

    vmem_limit = int(max(32 << 20,
                         min(phys_vmem - (8 << 20), est + (16 << 20))))

    out = pl.pallas_call(
        kernel,
        out_shape=jax.ShapeDtypeStruct((M, C), out_dtype),
        grid_spec=grid_spec,
        compiler_params=pltpu.CompilerParams(
            dimension_semantics=dims, vmem_limit_bytes=vmem_limit),
        cost_estimate=cost,
    )(x2, w1, b1, w2, b2)
    return out.reshape(B, T, C)


def mlp_reference(x, w_fc, b_fc, w_proj, b_proj):
    h = x @ w_fc + b_fc
    h = _gelu_tanh(h)
    return h @ w_proj + b_proj


if __name__ == "__main__":
    # Small config consistent with the module (n_embd -> 4*n_embd -> n_embd).
    B, T, C = 2, 8, 128
    H = 4 * C

    key = jax.random.PRNGKey(0)
    kx, k1, k2, k3, k4 = jax.random.split(key, 5)

    x = jax.random.normal(kx, (B, T, C), dtype=jnp.float32)

    # nn.Linear(C, 4C): weight (4C, C), bias (4C).  Pre-transpose to (C, 4C).
    w_fc_t = jax.random.normal(k1, (H, C), dtype=jnp.float32) * 0.02
    b_fc = jax.random.normal(k2, (H,), dtype=jnp.float32) * 0.02
    # nn.Linear(4C, C): weight (C, 4C), bias (C).  Pre-transpose to (4C, C).
    w_pr_t = jax.random.normal(k3, (C, H), dtype=jnp.float32) * 0.02
    b_pr = jax.random.normal(k4, (C,), dtype=jnp.float32) * 0.02

    w_fc = w_fc_t.T      # (C, 4C)
    w_proj = w_pr_t.T    # (4C, C)

    ref = mlp_reference(x, w_fc, b_fc, w_proj, b_pr)

    # Fast path (weights resident in VMEM) — the default for this size.
    out_fast = jax.block_until_ready(mlp_forward(x, w_fc, b_fc, w_proj, b_pr))
    assert out_fast.shape == (B, T, C)
    assert jnp.allclose(out_fast, ref, atol=2e-2, rtol=2e-2), \
        "resident-path mismatch vs reference"

    # Tiled-reduction fallback path, exercised explicitly (multi-step H loop).
    out_tiled = jax.block_until_ready(
        mlp_forward(x, w_fc, b_fc, w_proj, b_pr, th=128, force_tiled=True))
    assert out_tiled.shape == (B, T, C)
    assert jnp.allclose(out_tiled, ref, atol=2e-2, rtol=2e-2), \
        "tiled-path mismatch vs reference"

    print("KERNEL_OK")
</pallas_src>

<mosaic_0001>
module attributes {stable_mosaic.version = 11 : i64} {
  func.func @_mlp_kernel_resident(%arg0: i32, %arg1: memref<16x128xbf16, #tpu.memory_space<vmem>>, %arg2: memref<128x512xbf16, #tpu.memory_space<vmem>>, %arg3: memref<1x512xf32, #tpu.memory_space<vmem>>, %arg4: memref<512x128xbf16, #tpu.memory_space<vmem>>, %arg5: memref<1x128xf32, #tpu.memory_space<vmem>>, %arg6: memref<16x128xf32, #tpu.memory_space<vmem>>) attributes {dimension_semantics = [#tpu.dimension_semantics<parallel>], iteration_bounds = array<i64: 1>, scalar_prefetch = 0 : i64, scratch_operands = 0 : i64, tpu.core_type = #tpu.core_type<tc>, window_params = [{transform_indices = @transform_0, window_bounds = array<i64: 16, 128>}, {pipeline_mode = #tpu.pipeline_mode<synchronous>, transform_indices = @transform_1, window_bounds = array<i64: 128, 512>}, {pipeline_mode = #tpu.pipeline_mode<synchronous>, transform_indices = @transform_2, window_bounds = array<i64: 1, 512>}, {pipeline_mode = #tpu.pipeline_mode<synchronous>, transform_indices = @transform_3, window_bounds = array<i64: 512, 128>}, {pipeline_mode = #tpu.pipeline_mode<synchronous>, transform_indices = @transform_4, window_bounds = array<i64: 1, 128>}, {transform_indices = @transform_5, window_bounds = array<i64: 16, 128>}]} {
    %c0 = arith.constant 0 : index
    %c0_0 = arith.constant 0 : index
    %0 = vector.load %arg1[%c0, %c0_0] : memref<16x128xbf16, #tpu.memory_space<vmem>>, vector<16x128xbf16>
    %c0_1 = arith.constant 0 : index
    %c0_2 = arith.constant 0 : index
    %1 = vector.load %arg2[%c0_1, %c0_2] : memref<128x512xbf16, #tpu.memory_space<vmem>>, vector<128x512xbf16>
    %cst = arith.constant dense<0.000000e+00> : vector<16x512xf32>
    %2 = tpu.matmul %0, %1, %cst {dimension_numbers = #tpu.dot_dimension_numbers<[1], [0], [0], [1], [0, 0, 1, 1], [], []>} : vector<16x128xbf16>, vector<128x512xbf16>, vector<16x512xf32> -> vector<16x512xf32>
    %c0_3 = arith.constant 0 : index
    %c0_4 = arith.constant 0 : index
    %3 = vector.load %arg3[%c0_3, %c0_4] : memref<1x512xf32, #tpu.memory_space<vmem>>, vector<1x512xf32>
    %4 = vector.broadcast %3 : vector<1x512xf32> to vector<16x512xf32>
    %5 = arith.addf %2, %4 : vector<16x512xf32>
    %cst_5 = arith.constant 5.000000e-01 : f32
    %6 = vector.broadcast %cst_5 : f32 to vector<16x512xf32>
    %7 = arith.mulf %6, %5 : vector<16x512xf32>
    %cst_6 = arith.constant 4.471500e-02 : f32
    %8 = vector.broadcast %cst_6 : f32 to vector<16x512xf32>
    %9 = arith.mulf %8, %5 : vector<16x512xf32>
    %10 = arith.mulf %9, %5 : vector<16x512xf32>
    %11 = arith.mulf %10, %5 : vector<16x512xf32>
    %12 = arith.addf %5, %11 : vector<16x512xf32>
    %cst_7 = arith.constant 0.797884583 : f32
    %13 = vector.broadcast %cst_7 : f32 to vector<16x512xf32>
    %14 = arith.mulf %13, %12 : vector<16x512xf32>
    %15 = math.tanh %14 : vector<16x512xf32>
    %cst_8 = arith.constant 1.000000e+00 : f32
    %16 = vector.broadcast %cst_8 : f32 to vector<16x512xf32>
    %17 = arith.addf %16, %15 : vector<16x512xf32>
    %18 = arith.mulf %7, %17 : vector<16x512xf32>
    %19 = arith.truncf %18 : vector<16x512xf32> to vector<16x512xbf16>
    %c0_9 = arith.constant 0 : index
    %c0_10 = arith.constant 0 : index
    %20 = vector.load %arg4[%c0_9, %c0_10] : memref<512x128xbf16, #tpu.memory_space<vmem>>, vector<512x128xbf16>
    %cst_11 = arith.constant dense<0.000000e+00> : vector<16x128xf32>
    %21 = tpu.matmul %19, %20, %cst_11 {dimension_numbers = #tpu.dot_dimension_numbers<[1], [0], [0], [1], [0, 0, 1, 1], [], []>} : vector<16x512xbf16>, vector<512x128xbf16>, vector<16x128xf32> -> vector<16x128xf32>
    %c0_12 = arith.constant 0 : index
    %c0_13 = arith.constant 0 : index
    %22 = vector.load %arg5[%c0_12, %c0_13] : memref<1x128xf32, #tpu.memory_space<vmem>>, vector<1x128xf32>
    %23 = vector.broadcast %22 : vector<1x128xf32> to vector<16x128xf32>
    %24 = arith.addf %21, %23 : vector<16x128xf32>
    %c0_14 = arith.constant 0 : index
    %c0_15 = arith.constant 0 : index
    %25 = vector.load %arg6[%c0_14, %c0_15] : memref<16x128xf32, #tpu.memory_space<vmem>>, vector<16x128xf32>
    tpu.vector_store %arg6[%c0_14, %c0_15], %24 {strides = array<i32>} : memref<16x128xf32, #tpu.memory_space<vmem>>, vector<16x128xf32>,
    return
  }
  func.func @transform_0(%arg0: i32) -> (i32, i32) {
    %c0_i32 = arith.constant 0 : i32
    %c0_i32_0 = arith.constant 0 : i32
    return %arg0, %c0_i32 : i32, i32
  }
  func.func @transform_1(%arg0: i32) -> (i32, i32) {
    %c0_i32 = arith.constant 0 : i32
    %c0_i32_0 = arith.constant 0 : i32
    %c0_i32_1 = arith.constant 0 : i32
    return %c0_i32, %c0_i32_0 : i32, i32
  }
  func.func @transform_2(%arg0: i32) -> (i32, i32) {
    %c0_i32 = arith.constant 0 : i32
    %c0_i32_0 = arith.constant 0 : i32
    %c0_i32_1 = arith.constant 0 : i32
    return %c0_i32, %c0_i32_0 : i32, i32
  }
  func.func @transform_3(%arg0: i32) -> (i32, i32) {
    %c0_i32 = arith.constant 0 : i32
    %c0_i32_0 = arith.constant 0 : i32
    %c0_i32_1 = arith.constant 0 : i32
    return %c0_i32, %c0_i32_0 : i32, i32
  }
  func.func @transform_4(%arg0: i32) -> (i32, i32) {
    %c0_i32 = arith.constant 0 : i32
    %c0_i32_0 = arith.constant 0 : i32
    %c0_i32_1 = arith.constant 0 : i32
    return %c0_i32, %c0_i32_0 : i32, i32
  }
  func.func @transform_5(%arg0: i32) -> (i32, i32) {
    %c0_i32 = arith.constant 0 : i32
    %c0_i32_0 = arith.constant 0 : i32
    return %arg0, %c0_i32 : i32, i32
  }
}

</mosaic_0001>

<llo_original>
// kernel: tpu_custom_call.1
$region0: #{tpu_custom_call.1}
  #allocation0 [shape = 'u32[]', space=smem, size = 0x4, offset = 0x4, fixed_abs, tag = 'smem constant byte address 0x4 - core index']
  #allocation1 [shape = 'u32[144,128]{1,0:T(1,128)}', space=vmem, size = 0x12000, scoped, tag = 'internal scratch']
  %s0 = inlined_call_operand.hbm [shape: bf16[16,128], index: 0, kind: input, shape index: {}]
  %s1 = inlined_call_operand.hbm [shape: bf16[128,512], index: 1, kind: input, shape index: {}]
  %s2 = inlined_call_operand.hbm [shape: f32[1,512], index: 2, kind: input, shape index: {}]
  %s3 = inlined_call_operand.hbm [shape: bf16[512,128], index: 3, kind: input, shape index: {}]
  %s4 = inlined_call_operand.vmem [shape: f32[1,128], index: 4, kind: input, shape index: {}]
  %s5 = inlined_call_operand.hbm [shape: f32[16,128], index: 5, kind: output, shape index: {}]
  %s6 = sld [smem:[#allocation0]]
  $region46: #{tpu_custom_call.1} parent=0
    _
  %s8 = ssub.s32 1, %s6
  %s9 = scalar_select 0, %s8, %s6
  $region1: #{tpu_custom_call.1} parent=0
    #allocation2 [shape = 'u8[4096]{0}', space=vmem, size = 0x1000, scoped, tag = 'input window, operand 0, single buffered']
    #allocation3 [shape = 's32[1]{0}', space=sflag, size = 0x4, scoped, tag = 'scoped memory for tpu_custom_call.1']
    #allocation4 [shape = 's32[1]{0}', space=sflag, size = 0x4, scoped, tag = 'scoped memory for tpu_custom_call.1']
    #allocation5 [shape = 'u8[131072]{0}', space=vmem, size = 0x20000, scoped, tag = 'input window, operand 1, single buffered']
    #allocation6 [shape = 's32[1]{0}', space=sflag, size = 0x4, scoped, tag = 'scoped memory for tpu_custom_call.1']
    #allocation7 [shape = 'u8[2048]{0}', space=vmem, size = 0x800, scoped, tag = 'input window, operand 2, single buffered']
    #allocation8 [shape = 'u8[131072]{0}', space=vmem, size = 0x20000, scoped, tag = 'input window, operand 3, single buffered']
    #allocation9 [shape = 's32[1]{0}', space=sflag, size = 0x4, scoped, tag = 'scoped memory for tpu_custom_call.1']
    #allocation10 [shape = 'u8[8192]{0}', space=vmem, size = 0x2000, scoped, tag = 'output window, operand 0, single buffered']
    %10 = vsyncpa [#allocation3], 0
    %11 = vsyncpa [#allocation6], 0
    %12 = vsyncpa [#allocation9], 0
    %13 = vsyncpa [#allocation4], 0
    // Predicated region
    $region2: #{tpu_custom_call.1} parent=1 // pred_check
      _
    $region3: #{tpu_custom_call.1} parent=1 // pred_check_branch
      %15 = sbr.rel (0) target = $region5
    $region4: #{tpu_custom_call.1} parent=1 // pred_region
      %s17 = ssub.s32 128, 128
      %18 = vsyncadd [#allocation3], %s17
      %s19 = sshll.u32 [#allocation2], 4
      %s20 = int_to_ptr.vmem [resolvable:$true] %s19
      %25 = dma.hbm_to_vmem [thread:$0]  %s0, 128, %s20, [#allocation3], 64, 64, 4
    $region5: #{tpu_custom_call.1} parent=1 // pred_fallthru
      _
    // Predicated region
    $region6: #{tpu_custom_call.1} parent=1 // pred_check
      _
    $region7: #{tpu_custom_call.1} parent=1 // pred_check_branch
      %27 = sbr.rel (0) target = $region9
    $region8: #{tpu_custom_call.1} parent=1 // pred_region
      %s29 = ssub.s32 4096, 4096
      %30 = vsyncadd [#allocation6], %s29
      %s31 = sshll.u32 [#allocation5], 4
      %s32 = int_to_ptr.vmem [resolvable:$true] %s31
      %37 = dma.hbm_to_vmem [thread:$0]  %s1, 4096, %s32, [#allocation6], 256, 256, 16
    $region9: #{tpu_custom_call.1} parent=1 // pred_fallthru
      _
    // Predicated region
    $region10: #{tpu_custom_call.1} parent=1 // pred_check
      _
    $region11: #{tpu_custom_call.1} parent=1 // pred_check_branch
      %39 = sbr.rel (0) target = $region13
    $region12: #{tpu_custom_call.1} parent=1 // pred_region
      %s41 = ssub.s32 64, 64
      %42 = vsyncadd [#allocation6], %s41
      %s44 = sshll.u32 [#allocation7], 4
      %s45 = int_to_ptr.vmem [resolvable:$true] %s44
      %47 = dma.hbm_to_vmem [thread:$0]  %s2, 64, %s45, [#allocation6]
    $region13: #{tpu_custom_call.1} parent=1 // pred_fallthru
      _
    // Predicated region
    $region14: #{tpu_custom_call.1} parent=1 // pred_check
      _
    $region15: #{tpu_custom_call.1} parent=1 // pred_check_branch
      %49 = sbr.rel (0) target = $region17
    $region16: #{tpu_custom_call.1} parent=1 // pred_region
      %s51 = ssub.s32 4096, 4096
      %52 = vsyncadd [#allocation9], %s51
      %s53 = sshll.u32 [#allocation8], 4
      %s54 = int_to_ptr.vmem [resolvable:$true] %s53
      %59 = dma.hbm_to_vmem [thread:$0]  %s3, 4096, %s54, [#allocation9], 64, 64, 4
    $region17: #{tpu_custom_call.1} parent=1 // pred_fallthru
      _
    // Predicated region
    $region18: #{tpu_custom_call.1} parent=1 // pred_check
      _
    $region19: #{tpu_custom_call.1} parent=1 // pred_check_branch
      %61 = sbr.rel (0) target = $region21
    $region20: #{tpu_custom_call.1} parent=1 // pred_region
      _
    $region21: #{tpu_custom_call.1} parent=1 // pred_fallthru
      _
    // Predicated region
    $region22: #{tpu_custom_call.1} parent=1 // pred_check
      _
    $region23: #{tpu_custom_call.1} parent=1 // pred_check_branch
      %63 = sbr.rel (0) target = $region25
    $region24: #{tpu_custom_call.1} parent=1 // pred_region
      %64 = dma.done [#allocation3], 128
    $region25: #{tpu_custom_call.1} parent=1 // pred_fallthru
      _
    // Predicated region
    $region26: #{tpu_custom_call.1} parent=1 // pred_check
      _
    $region27: #{tpu_custom_call.1} parent=1 // pred_check_branch
      %66 = sbr.rel (0) target = $region29
    $region28: #{tpu_custom_call.1} parent=1 // pred_region
      %67 = dma.done [#allocation6], 4096
    $region29: #{tpu_custom_call.1} parent=1 // pred_fallthru
      _
    // Predicated region
    $region30: #{tpu_custom_call.1} parent=1 // pred_check
      _
    $region31: #{tpu_custom_call.1} parent=1 // pred_check_branch
      %69 = sbr.rel (0) target = $region33
    $region32: #{tpu_custom_call.1} parent=1 // pred_region
      %70 = dma.done [#allocation6], 64
    $region33: #{tpu_custom_call.1} parent=1 // pred_fallthru
      _
    // Predicated region
    $region34: #{tpu_custom_call.1} parent=1 // pred_check
      _
    $region35: #{tpu_custom_call.1} parent=1 // pred_check_branch
      %72 = sbr.rel (0) target = $region37
    $region36: #{tpu_custom_call.1} parent=1 // pred_region
      %73 = dma.done [#allocation9], 4096
    $region37: #{tpu_custom_call.1} parent=1 // pred_fallthru
      _
    %v75 = vld [vmem:[#allocation2] sm:$0xf]
    %v76 = vld [vmem:[#allocation2 + $0x4] sm:$0xf]
    %v77 = vld [vmem:[#allocation5] sm:$0xff]
    %v78 = vld [vmem:[#allocation5 + $0x8] sm:$0xff]
    %v79 = vld [vmem:[#allocation5 + $0x10] sm:$0xff]
    %v80 = vld [vmem:[#allocation5 + $0x18] sm:$0xff]
    %v81 = vld [vmem:[#allocation5 + $0x20] sm:$0xff]
    %v82 = vld [vmem:[#allocation5 + $0x28] sm:$0xff]
    %v83 = vld [vmem:[#allocation5 + $0x30] sm:$0xff]
    %v84 = vld [vmem:[#allocation5 + $0x38] sm:$0xff]
    %v85 = vld [vmem:[#allocation5 + $0x40] sm:$0xff]
    %v86 = vld [vmem:[#allocation5 + $0x48] sm:$0xff]
    %v87 = vld [vmem:[#allocation5 + $0x50] sm:$0xff]
    %v88 = vld [vmem:[#allocation5 + $0x58] sm:$0xff]
    %v89 = vld [vmem:[#allocation5 + $0x60] sm:$0xff]
    %v90 = vld [vmem:[#allocation5 + $0x68] sm:$0xff]
    %v91 = vld [vmem:[#allocation5 + $0x70] sm:$0xff]
    %v92 = vld [vmem:[#allocation5 + $0x78] sm:$0xff]
    %v93 = vld [vmem:[#allocation5 + $0x80] sm:$0xff]
    %v94 = vld [vmem:[#allocation5 + $0x88] sm:$0xff]
    %v95 = vld [vmem:[#allocation5 + $0x90] sm:$0xff]
    %v96 = vld [vmem:[#allocation5 + $0x98] sm:$0xff]
    %v97 = vld [vmem:[#allocation5 + $0xa0] sm:$0xff]
    %v98 = vld [vmem:[#allocation5 + $0xa8] sm:$0xff]
    %v99 = vld [vmem:[#allocation5 + $0xb0] sm:$0xff]
    %v100 = vld [vmem:[#allocation5 + $0xb8] sm:$0xff]
    %v101 = vld [vmem:[#allocation5 + $0xc0] sm:$0xff]
    %v102 = vld [vmem:[#allocation5 + $0xc8] sm:$0xff]
    %v103 = vld [vmem:[#allocation5 + $0xd0] sm:$0xff]
    %v104 = vld [vmem:[#allocation5 + $0xd8] sm:$0xff]
    %v105 = vld [vmem:[#allocation5 + $0xe0] sm:$0xff]
    %v106 = vld [vmem:[#allocation5 + $0xe8] sm:$0xff]
    %v107 = vld [vmem:[#allocation5 + $0xf0] sm:$0xff]
    %v108 = vld [vmem:[#allocation5 + $0xf8] sm:$0xff]
    %v109 = vld [vmem:[#allocation7] sm:$0xf]
    %v111 = vlaneseq
    %v112 = vshrl.u32 %v111, 7
    %v113 = vsub.s32 0, %v112
    %v114 = vrot.slane %v109, %v113
    %v115 = vlaneseq
    %v116 = vshrl.u32 %v115, 7
    %v117 = vsub.s32 1, %v116
    %v118 = vrot.slane %v109, %v117
    %v119 = vlaneseq
    %v120 = vshrl.u32 %v119, 7
    %v121 = vsub.s32 2, %v120
    %v122 = vrot.slane %v109, %v121
    %v123 = vlaneseq
    %v124 = vshrl.u32 %v123, 7
    %v125 = vsub.s32 3, %v124
    %v126 = vrot.slane %v109, %v125
    %v133 = vunpack.c.l.b16 %v75
    %v134 = vunpack.c.l.b16 %v76
    %v135 = vpack.c.b16 %v134, %v133
    %v169 = vunpack.c.l.b16 %v77
    %v170 = vunpack.c.h.b16 %v77
    %v171 = vunpack.c.l.b16 %v78
    %v172 = vunpack.c.h.b16 %v78
    %v173 = vunpack.c.l.b16 %v79
    %v174 = vunpack.c.h.b16 %v79
    %v175 = vunpack.c.l.b16 %v80
    %v176 = vunpack.c.h.b16 %v80
    %v177 = vunpack.c.l.b16 %v81
    %v178 = vunpack.c.h.b16 %v81
    %v179 = vunpack.c.l.b16 %v82
    %v180 = vunpack.c.h.b16 %v82
    %v181 = vunpack.c.l.b16 %v83
    %v182 = vunpack.c.h.b16 %v83
    %v183 = vunpack.c.l.b16 %v84
    %v184 = vunpack.c.h.b16 %v84
    %v185 = vunpack.c.l.b16 %v85
    %v186 = vunpack.c.h.b16 %v85
    %v187 = vunpack.c.l.b16 %v86
    %v188 = vunpack.c.h.b16 %v86
    %v189 = vunpack.c.l.b16 %v87
    %v190 = vunpack.c.h.b16 %v87
    %v191 = vunpack.c.l.b16 %v88
    %v192 = vunpack.c.h.b16 %v88
    %v193 = vunpack.c.l.b16 %v89
    %v194 = vunpack.c.h.b16 %v89
    %v195 = vunpack.c.l.b16 %v90
    %v196 = vunpack.c.h.b16 %v90
    %v197 = vunpack.c.l.b16 %v91
    %v198 = vunpack.c.h.b16 %v91
    %v199 = vunpack.c.l.b16 %v92
    %v200 = vunpack.c.h.b16 %v92
    %v201 = vunpack.c.l.b16 %v93
    %v202 = vunpack.c.h.b16 %v93
    %v203 = vunpack.c.l.b16 %v94
    %v204 = vunpack.c.h.b16 %v94
    %v205 = vunpack.c.l.b16 %v95
    %v206 = vunpack.c.h.b16 %v95
    %v207 = vunpack.c.l.b16 %v96
    %v208 = vunpack.c.h.b16 %v96
    %v209 = vunpack.c.l.b16 %v97
    %v210 = vunpack.c.h.b16 %v97
    %v211 = vunpack.c.l.b16 %v98
    %v212 = vunpack.c.h.b16 %v98
    %v213 = vunpack.c.l.b16 %v99
    %v214 = vunpack.c.h.b16 %v99
    %v215 = vunpack.c.l.b16 %v100
    %v216 = vunpack.c.h.b16 %v100
    %v217 = vunpack.c.l.b16 %v101
    %v218 = vunpack.c.h.b16 %v101
    %v219 = vunpack.c.l.b16 %v102
    %v220 = vunpack.c.h.b16 %v102
    %v221 = vunpack.c.l.b16 %v103
    %v222 = vunpack.c.h.b16 %v103
    %v223 = vunpack.c.l.b16 %v104
    %v224 = vunpack.c.h.b16 %v104
    %v225 = vunpack.c.l.b16 %v105
    %v226 = vunpack.c.h.b16 %v105
    %v227 = vunpack.c.l.b16 %v106
    %v228 = vunpack.c.h.b16 %v106
    %v229 = vunpack.c.l.b16 %v107
    %v230 = vunpack.c.h.b16 %v107
    %v231 = vunpack.c.l.b16 %v108
    %v232 = vunpack.c.h.b16 %v108
    %v233 = vpack.c.b16 %v173, %v169
    %v234 = vpack.c.b16 %v174, %v170
    %v235 = vpack.c.b16 %v175, %v171
    %v236 = vpack.c.b16 %v176, %v172
    %v237 = vpack.c.b16 %v181, %v177
    %v238 = vpack.c.b16 %v182, %v178
    %v239 = vpack.c.b16 %v183, %v179
    %v240 = vpack.c.b16 %v184, %v180
    %v241 = vpack.c.b16 %v189, %v185
    %v242 = vpack.c.b16 %v190, %v186
    %v243 = vpack.c.b16 %v191, %v187
    %v244 = vpack.c.b16 %v192, %v188
    %v245 = vpack.c.b16 %v197, %v193
    %v246 = vpack.c.b16 %v198, %v194
    %v247 = vpack.c.b16 %v199, %v195
    %v248 = vpack.c.b16 %v200, %v196
    %v249 = vpack.c.b16 %v205, %v201
    %v250 = vpack.c.b16 %v206, %v202
    %v251 = vpack.c.b16 %v207, %v203
    %v252 = vpack.c.b16 %v208, %v204
    %v253 = vpack.c.b16 %v213, %v209
    %v254 = vpack.c.b16 %v214, %v210
    %v255 = vpack.c.b16 %v215, %v211
    %v256 = vpack.c.b16 %v216, %v212
    %v257 = vpack.c.b16 %v221, %v217
    %v258 = vpack.c.b16 %v222, %v218
    %v259 = vpack.c.b16 %v223, %v219
    %v260 = vpack.c.b16 %v224, %v220
    %v261 = vpack.c.b16 %v229, %v225
    %v262 = vpack.c.b16 %v230, %v226
    %v263 = vpack.c.b16 %v231, %v227
    %v264 = vpack.c.b16 %v232, %v228
    %297 = vmatprep.subr.bf16.mxu0 %v262
    %298 = vmatpush1.bf16.msra.mxu0 %v261
    %299 = vmatprep.subr.bf16.mxu0 %v258
    %300 = vmatpush1.bf16.msra.mxu0 %v257
    %301 = vmatprep.subr.bf16.mxu0 %v254
    %302 = vmatpush1.bf16.msra.mxu0 %v253
    %303 = vmatprep.subr.bf16.mxu0 %v250
    %304 = vmatpush1.bf16.msra.mxu0 %v249
    %305 = vmatprep.subr.bf16.mxu0 %v246
    %306 = vmatpush1.bf16.msra.mxu0 %v245
    %307 = vmatprep.subr.bf16.mxu0 %v242
    %308 = vmatpush1.bf16.msra.mxu0 %v241
    %309 = vmatprep.subr.bf16.mxu0 %v238
    %310 = vmatpush1.bf16.msra.mxu0 %v237
    %311 = vmatprep.subr.bf16.mxu0 %v234
    %312 = vmatpush1.bf16.msra.mxu0 %v233
    %313 = vmatprep.subr.bf16.mxu0 0
    %314 = vmatpush2.bf16.msra.mxu0 0
    %315 = vmatprep.subr.bf16.mxu0 0
    %316 = vmatpush2.bf16.msra.mxu0 0
    %317 = vmatprep.subr.bf16.mxu0 0
    %318 = vmatpush2.bf16.msra.mxu0 0
    %319 = vmatprep.subr.bf16.mxu0 0
    %320 = vmatpush2.bf16.msra.mxu0 0
    %321 = vmatprep.subr.bf16.mxu0 0
    %322 = vmatpush2.bf16.msra.mxu0 0
    %323 = vmatprep.subr.bf16.mxu0 0
    %324 = vmatpush2.bf16.msra.mxu0 0
    %325 = vmatprep.subr.bf16.mxu0 0
    %326 = vmatpush2.bf16.msra.mxu0 0
    %327 = vmatprep.subr.bf16.mxu0 0
    %328 = vmatpush2.bf16.msra.mxu0 0
    %329 = vmatprep.mubr.bf16.mxu0 0
    %330 = vmatmul.mubr.bf16.gmra.mxu0 %v135
    %v331 = vpop.f32.mrf.mxu0
    %v332 = vadd.f32 %v114, %v331
    %v333 = vpop.f32.mrf.mxu0
    %v334 = vadd.f32 %v118, %v333
    %v335 = vpop.f32.mrf.mxu0
    %v336 = vadd.f32 %v114, %v335
    %v337 = vpop.f32.mrf.mxu0
    %v338 = vadd.f32 %v118, %v337
    %339 = vdwg.mxu0
    %340 = vmatprep.subr.bf16.mxu0 %v264
    %341 = vmatpush1.bf16.msra.mxu0 %v263
    %342 = vmatprep.subr.bf16.mxu0 %v260
    %343 = vmatpush1.bf16.msra.mxu0 %v259
    %344 = vmatprep.subr.bf16.mxu0 %v256
    %345 = vmatpush1.bf16.msra.mxu0 %v255
    %346 = vmatprep.subr.bf16.mxu0 %v252
    %347 = vmatpush1.bf16.msra.mxu0 %v251
    %348 = vmatprep.subr.bf16.mxu0 %v248
    %349 = vmatpush1.bf16.msra.mxu0 %v247
    %350 = vmatprep.subr.bf16.mxu0 %v244
    %351 = vmatpush1.bf16.msra.mxu0 %v243
    %352 = vmatprep.subr.bf16.mxu0 %v240
    %353 = vmatpush1.bf16.msra.mxu0 %v239
    %354 = vmatprep.subr.bf16.mxu0 %v236
    %355 = vmatpush1.bf16.msra.mxu0 %v235
    %356 = vmatprep.subr.bf16.mxu0 0
    %357 = vmatpush2.bf16.msra.mxu0 0
    %358 = vmatprep.subr.bf16.mxu0 0
    %359 = vmatpush2.bf16.msra.mxu0 0
    %360 = vmatprep.subr.bf16.mxu0 0
    %361 = vmatpush2.bf16.msra.mxu0 0
    %362 = vmatprep.subr.bf16.mxu0 0
    %363 = vmatpush2.bf16.msra.mxu0 0
    %364 = vmatprep.subr.bf16.mxu0 0
    %365 = vmatpush2.bf16.msra.mxu0 0
    %366 = vmatprep.subr.bf16.mxu0 0
    %367 = vmatpush2.bf16.msra.mxu0 0
    %368 = vmatprep.subr.bf16.mxu0 0
    %369 = vmatpush2.bf16.msra.mxu0 0
    %370 = vmatprep.subr.bf16.mxu0 0
    %371 = vmatpush2.bf16.msra.mxu0 0
    %372 = vmatprep.mubr.bf16.mxu0 0
    %373 = vmatmul.mubr.bf16.gmra.mxu0 %v135
    %v374 = vpop.f32.mrf.mxu0
    %v375 = vadd.f32 %v122, %v374
    %v376 = vpop.f32.mrf.mxu0
    %v377 = vadd.f32 %v126, %v376
    %v378 = vpop.f32.mrf.mxu0
    %v379 = vadd.f32 %v122, %v378
    %v380 = vpop.f32.mrf.mxu0
    %v381 = vadd.f32 %v126, %v380
    %382 = vdwg.mxu0
    %v383 = vmul.f32 %v332, 0.5
    %v384 = vmul.f32 %v334, 0.5
    %v385 = vmul.f32 %v375, 0.5
    %v386 = vmul.f32 %v377, 0.5
    %v387 = vmul.f32 %v336, 0.5
    %v388 = vmul.f32 %v338, 0.5
    %v389 = vmul.f32 %v379, 0.5
    %v390 = vmul.f32 %v381, 0.5
    %v391 = vmul.f32 %v332, 0.044715
    %v392 = vmul.f32 %v334, 0.044715
    %v393 = vmul.f32 %v375, 0.044715
    %v394 = vmul.f32 %v377, 0.044715
    %v395 = vmul.f32 %v336, 0.044715
    %v396 = vmul.f32 %v338, 0.044715
    %v397 = vmul.f32 %v379, 0.044715
    %v398 = vmul.f32 %v381, 0.044715
    %v399 = vmul.f32 %v391, %v332
    %v400 = vmul.f32 %v392, %v334
    %v401 = vmul.f32 %v393, %v375
    %v402 = vmul.f32 %v394, %v377
    %v403 = vmul.f32 %v395, %v336
    %v404 = vmul.f32 %v396, %v338
    %v405 = vmul.f32 %v397, %v379
    %v406 = vmul.f32 %v398, %v381
    %v407 = vmul.f32 %v399, %v332
    %v408 = vmul.f32 %v400, %v334
    %v409 = vmul.f32 %v401, %v375
    %v410 = vmul.f32 %v402, %v377
    %v411 = vmul.f32 %v403, %v336
    %v412 = vmul.f32 %v404, %v338
    %v413 = vmul.f32 %v405, %v379
    %v414 = vmul.f32 %v406, %v381
    %v415 = vadd.f32 %v332, %v407
    %v416 = vadd.f32 %v334, %v408
    %v417 = vadd.f32 %v375, %v409
    %v418 = vadd.f32 %v377, %v410
    %v419 = vadd.f32 %v336, %v411
    %v420 = vadd.f32 %v338, %v412
    %v421 = vadd.f32 %v379, %v413
    %v422 = vadd.f32 %v381, %v414
    %v423 = vmul.f32 %v415, 0.7978846
    %v424 = vmul.f32 %v416, 0.7978846
    %v425 = vmul.f32 %v417, 0.7978846
    %v426 = vmul.f32 %v418, 0.7978846
    %v427 = vmul.f32 %v419, 0.7978846
    %v428 = vmul.f32 %v420, 0.7978846
    %v429 = vmul.f32 %v421, 0.7978846
    %v430 = vmul.f32 %v422, 0.7978846
    %v431 = vtanh.pop %v423
    %v432 = vtanh.pop %v424
    %v433 = vtanh.pop %v425
    %v434 = vtanh.pop %v426
    %v435 = vtanh.pop %v427
    %v436 = vtanh.pop %v428
    %v437 = vtanh.pop %v429
    %v438 = vtanh.pop %v430
    %v439 = vadd.f32 %v431, 1.0
    %v440 = vadd.f32 %v432, 1.0
    %v441 = vadd.f32 %v433, 1.0
    %v442 = vadd.f32 %v434, 1.0
    %v443 = vadd.f32 %v435, 1.0
    %v444 = vadd.f32 %v436, 1.0
    %v445 = vadd.f32 %v437, 1.0
    %v446 = vadd.f32 %v438, 1.0
    %v447 = vmul.f32 %v383, %v439
    %v448 = vmul.f32 %v384, %v440
    %v449 = vmul.f32 %v385, %v441
    %v450 = vmul.f32 %v386, %v442
    %v451 = vmul.f32 %v387, %v443
    %v452 = vmul.f32 %v388, %v444
    %v453 = vmul.f32 %v389, %v445
    %v454 = vmul.f32 %v390, %v446
    %v455 = vpack.c.bf16 %v451, %v447
    %v456 = vpack.c.bf16 %v452, %v448
    %v457 = vpack.c.bf16 %v453, %v449
    %v458 = vpack.c.bf16 %v454, %v450
    %v459 = vld [vmem:[#allocation8] sm:$0xf]
    %v460 = vld [vmem:[#allocation8 + $0x4] sm:$0xf]
    %v461 = vld [vmem:[#allocation8 + $0x8] sm:$0xf]
    %v462 = vld [vmem:[#allocation8 + $0xc] sm:$0xf]
    %v463 = vld [vmem:[#allocation8 + $0x10] sm:$0xf]
    %v464 = vld [vmem:[#allocation8 + $0x14] sm:$0xf]
    %v465 = vld [vmem:[#allocation8 + $0x18] sm:$0xf]
    %v466 = vld [vmem:[#allocation8 + $0x1c] sm:$0xf]
    %v467 = vld [vmem:[#allocation8 + $0x20] sm:$0xf]
    %v468 = vld [vmem:[#allocation8 + $0x24] sm:$0xf]
    %v469 = vld [vmem:[#allocation8 + $0x28] sm:$0xf]
    %v470 = vld [vmem:[#allocation8 + $0x2c] sm:$0xf]
    %v471 = vld [vmem:[#allocation8 + $0x30] sm:$0xf]
    %v472 = vld [vmem:[#allocation8 + $0x34] sm:$0xf]
    %v473 = vld [vmem:[#allocation8 + $0x38] sm:$0xf]
    %v474 = vld [vmem:[#allocation8 + $0x3c] sm:$0xf]
    %v475 = vld [vmem:[#allocation8 + $0x40] sm:$0xf]
    %v476 = vld [vmem:[#allocation8 + $0x44] sm:$0xf]
    %v477 = vld [vmem:[#allocation8 + $0x48] sm:$0xf]
    %v478 = vld [vmem:[#allocation8 + $0x4c] sm:$0xf]
    %v479 = vld [vmem:[#allocation8 + $0x50] sm:$0xf]
    %v480 = vld [vmem:[#allocation8 + $0x54] sm:$0xf]
    %v481 = vld [vmem:[#allocation8 + $0x58] sm:$0xf]
    %v482 = vld [vmem:[#allocation8 + $0x5c] sm:$0xf]
    %v483 = vld [vmem:[#allocation8 + $0x60] sm:$0xf]
    %v484 = vld [vmem:[#allocation8 + $0x64] sm:$0xf]
    %v485 = vld [vmem:[#allocation8 + $0x68] sm:$0xf]
    %v486 = vld [vmem:[#allocation8 + $0x6c] sm:$0xf]
    %v487 = vld [vmem:[#allocation8 + $0x70] sm:$0xf]
    %v488 = vld [vmem:[#allocation8 + $0x74] sm:$0xf]
    %v489 = vld [vmem:[#allocation8 + $0x78] sm:$0xf]
    %v490 = vld [vmem:[#allocation8 + $0x7c] sm:$0xf]
    %v491 = vld [vmem:[#allocation8 + $0x80] sm:$0xf]
    %v492 = vld [vmem:[#allocation8 + $0x84] sm:$0xf]
    %v493 = vld [vmem:[#allocation8 + $0x88] sm:$0xf]
    %v494 = vld [vmem:[#allocation8 + $0x8c] sm:$0xf]
    %v495 = vld [vmem:[#allocation8 + $0x90] sm:$0xf]
    %v496 = vld [vmem:[#allocation8 + $0x94] sm:$0xf]
    %v497 = vld [vmem:[#allocation8 + $0x98] sm:$0xf]
    %v498 = vld [vmem:[#allocation8 + $0x9c] sm:$0xf]
    %v499 = vld [vmem:[#allocation8 + $0xa0] sm:$0xf]
    %v500 = vld [vmem:[#allocation8 + $0xa4] sm:$0xf]
    %v501 = vld [vmem:[#allocation8 + $0xa8] sm:$0xf]
    %v502 = vld [vmem:[#allocation8 + $0xac] sm:$0xf]
    %v503 = vld [vmem:[#allocation8 + $0xb0] sm:$0xf]
    %v504 = vld [vmem:[#allocation8 + $0xb4] sm:$0xf]
    %v505 = vld [vmem:[#allocation8 + $0xb8] sm:$0xf]
    %v506 = vld [vmem:[#allocation8 + $0xbc] sm:$0xf]
    %v507 = vld [vmem:[#allocation8 + $0xc0] sm:$0xf]
    %v508 = vld [vmem:[#allocation8 + $0xc4] sm:$0xf]
    %v509 = vld [vmem:[#allocation8 + $0xc8] sm:$0xf]
    %v510 = vld [vmem:[#allocation8 + $0xcc] sm:$0xf]
    %v511 = vld [vmem:[#allocation8 + $0xd0] sm:$0xf]
    %v512 = vld [vmem:[#allocation8 + $0xd4] sm:$0xf]
    %v513 = vld [vmem:[#allocation8 + $0xd8] sm:$0xf]
    %v514 = vld [vmem:[#allocation8 + $0xdc] sm:$0xf]
    %v515 = vld [vmem:[#allocation8 + $0xe0] sm:$0xf]
    %v516 = vld [vmem:[#allocation8 + $0xe4] sm:$0xf]
    %v517 = vld [vmem:[#allocation8 + $0xe8] sm:$0xf]
    %v518 = vld [vmem:[#allocation8 + $0xec] sm:$0xf]
    %v519 = vld [vmem:[#allocation8 + $0xf0] sm:$0xf]
    %v520 = vld [vmem:[#allocation8 + $0xf4] sm:$0xf]
    %v521 = vld [vmem:[#allocation8 + $0xf8] sm:$0xf]
    %v522 = vld [vmem:[#allocation8 + $0xfc] sm:$0xf]
    %v523 = vld [vmem:[%s4] sm:$0x1]
    %v525 = vlaneseq
    %v526 = vshrl.u32 %v525, 7
    %v527 = vsub.s32 0, %v526
    %v528 = vrot.slane %v523, %v527
    %v594 = vunpack.c.l.b16 %v459
    %v595 = vunpack.c.l.b16 %v460
    %v596 = vunpack.c.l.b16 %v461
    %v597 = vunpack.c.l.b16 %v462
    %v598 = vunpack.c.l.b16 %v463
    %v599 = vunpack.c.l.b16 %v464
    %v600 = vunpack.c.l.b16 %v465
    %v601 = vunpack.c.l.b16 %v466
    %v602 = vunpack.c.l.b16 %v467
    %v603 = vunpack.c.l.b16 %v468
    %v604 = vunpack.c.l.b16 %v469
    %v605 = vunpack.c.l.b16 %v470
    %v606 = vunpack.c.l.b16 %v471
    %v607 = vunpack.c.l.b16 %v472
    %v608 = vunpack.c.l.b16 %v473
    %v609 = vunpack.c.l.b16 %v474
    %v610 = vunpack.c.l.b16 %v475
    %v611 = vunpack.c.l.b16 %v476
    %v612 = vunpack.c.l.b16 %v477
    %v613 = vunpack.c.l.b16 %v478
    %v614 = vunpack.c.l.b16 %v479
    %v615 = vunpack.c.l.b16 %v480
    %v616 = vunpack.c.l.b16 %v481
    %v617 = vunpack.c.l.b16 %v482
    %v618 = vunpack.c.l.b16 %v483
    %v619 = vunpack.c.l.b16 %v484
    %v620 = vunpack.c.l.b16 %v485
    %v621 = vunpack.c.l.b16 %v486
    %v622 = vunpack.c.l.b16 %v487
    %v623 = vunpack.c.l.b16 %v488
    %v624 = vunpack.c.l.b16 %v489
    %v625 = vunpack.c.l.b16 %v490
    %v626 = vunpack.c.l.b16 %v491
    %v627 = vunpack.c.l.b16 %v492
    %v628 = vunpack.c.l.b16 %v493
    %v629 = vunpack.c.l.b16 %v494
    %v630 = vunpack.c.l.b16 %v495
    %v631 = vunpack.c.l.b16 %v496
    %v632 = vunpack.c.l.b16 %v497
    %v633 = vunpack.c.l.b16 %v498
    %v634 = vunpack.c.l.b16 %v499
    %v635 = vunpack.c.l.b16 %v500
    %v636 = vunpack.c.l.b16 %v501
    %v637 = vunpack.c.l.b16 %v502
    %v638 = vunpack.c.l.b16 %v503
    %v639 = vunpack.c.l.b16 %v504
    %v640 = vunpack.c.l.b16 %v505
    %v641 = vunpack.c.l.b16 %v506
    %v642 = vunpack.c.l.b16 %v507
    %v643 = vunpack.c.l.b16 %v508
    %v644 = vunpack.c.l.b16 %v509
    %v645 = vunpack.c.l.b16 %v510
    %v646 = vunpack.c.l.b16 %v511
    %v647 = vunpack.c.l.b16 %v512
    %v648 = vunpack.c.l.b16 %v513
    %v649 = vunpack.c.l.b16 %v514
    %v650 = vunpack.c.l.b16 %v515
    %v651 = vunpack.c.l.b16 %v516
    %v652 = vunpack.c.l.b16 %v517
    %v653 = vunpack.c.l.b16 %v518
    %v654 = vunpack.c.l.b16 %v519
    %v655 = vunpack.c.l.b16 %v520
    %v656 = vunpack.c.l.b16 %v521
    %v657 = vunpack.c.l.b16 %v522
    %v658 = vpack.c.b16 %v595, %v594
    %v659 = vpack.c.b16 %v597, %v596
    %v660 = vpack.c.b16 %v599, %v598
    %v661 = vpack.c.b16 %v601, %v600
    %v662 = vpack.c.b16 %v603, %v602
    %v663 = vpack.c.b16 %v605, %v604
    %v664 = vpack.c.b16 %v607, %v606
    %v665 = vpack.c.b16 %v609, %v608
    %v666 = vpack.c.b16 %v611, %v610
    %v667 = vpack.c.b16 %v613, %v612
    %v668 = vpack.c.b16 %v615, %v614
    %v669 = vpack.c.b16 %v617, %v616
    %v670 = vpack.c.b16 %v619, %v618
    %v671 = vpack.c.b16 %v621, %v620
    %v672 = vpack.c.b16 %v623, %v622
    %v673 = vpack.c.b16 %v625, %v624
    %v674 = vpack.c.b16 %v627, %v626
    %v675 = vpack.c.b16 %v629, %v628
    %v676 = vpack.c.b16 %v631, %v630
    %v677 = vpack.c.b16 %v633, %v632
    %v678 = vpack.c.b16 %v635, %v634
    %v679 = vpack.c.b16 %v637, %v636
    %v680 = vpack.c.b16 %v639, %v638
    %v681 = vpack.c.b16 %v641, %v640
    %v682 = vpack.c.b16 %v643, %v642
    %v683 = vpack.c.b16 %v645, %v644
    %v684 = vpack.c.b16 %v647, %v646
    %v685 = vpack.c.b16 %v649, %v648
    %v686 = vpack.c.b16 %v651, %v650
    %v687 = vpack.c.b16 %v653, %v652
    %v688 = vpack.c.b16 %v655, %v654
    %v689 = vpack.c.b16 %v657, %v656
    %722 = vmatprep.subr.bf16.mxu0 0
    %723 = vmatpush1.bf16.msra.mxu0 %v665
    %724 = vmatprep.subr.bf16.mxu0 0
    %725 = vmatpush1.bf16.msra.mxu0 %v664
    %726 = vmatprep.subr.bf16.mxu0 0
    %727 = vmatpush1.bf16.msra.mxu0 %v663
    %728 = vmatprep.subr.bf16.mxu0 0
    %729 = vmatpush1.bf16.msra.mxu0 %v662
    %730 = vmatprep.subr.bf16.mxu0 0
    %731 = vmatpush1.bf16.msra.mxu0 %v661
    %732 = vmatprep.subr.bf16.mxu0 0
    %733 = vmatpush1.bf16.msra.mxu0 %v660
    %734 = vmatprep.subr.bf16.mxu0 0
    %735 = vmatpush1.bf16.msra.mxu0 %v659
    %736 = vmatprep.subr.bf16.mxu0 0
    %737 = vmatpush1.bf16.msra.mxu0 %v658
    %738 = vmatprep.subr.bf16.mxu0 0
    %739 = vmatpush2.bf16.msra.mxu0 %v673
    %740 = vmatprep.subr.bf16.mxu0 0
    %741 = vmatpush2.bf16.msra.mxu0 %v672
    %742 = vmatprep.subr.bf16.mxu0 0
    %743 = vmatpush2.bf16.msra.mxu0 %v671
    %744 = vmatprep.subr.bf16.mxu0 0
    %745 = vmatpush2.bf16.msra.mxu0 %v670
    %746 = vmatprep.subr.bf16.mxu0 0
    %747 = vmatpush2.bf16.msra.mxu0 %v669
    %748 = vmatprep.subr.bf16.mxu0 0
    %749 = vmatpush2.bf16.msra.mxu0 %v668
    %750 = vmatprep.subr.bf16.mxu0 0
    %751 = vmatpush2.bf16.msra.mxu0 %v667
    %752 = vmatprep.subr.bf16.mxu0 0
    %753 = vmatpush2.bf16.msra.mxu0 %v666
    %754 = vmatprep.mubr.bf16.mxu0 %v456
    %755 = vmatmul.mubr.bf16.gmra.mxu0 %v455
    %v756 = vpop.f32.mrf.mxu0
    %v757 = vadd.f32 %v528, %v756
    %v758 = vpop.f32.mrf.mxu0
    %v759 = vpop.f32.mrf.mxu0
    %v760 = vadd.f32 %v528, %v759
    %v761 = vpop.f32.mrf.mxu0
    %762 = vdwg.mxu0
    %763 = vmatprep.subr.bf16.mxu0 0
    %764 = vmatpush1.bf16.msra.mxu0 %v681
    %765 = vmatprep.subr.bf16.mxu0 0
    %766 = vmatpush1.bf16.msra.mxu0 %v680
    %767 = vmatprep.subr.bf16.mxu0 0
    %768 = vmatpush1.bf16.msra.mxu0 %v679
    %769 = vmatprep.subr.bf16.mxu0 0
    %770 = vmatpush1.bf16.msra.mxu0 %v678
    %771 = vmatprep.subr.bf16.mxu0 0
    %772 = vmatpush1.bf16.msra.mxu0 %v677
    %773 = vmatprep.subr.bf16.mxu0 0
    %774 = vmatpush1.bf16.msra.mxu0 %v676
    %775 = vmatprep.subr.bf16.mxu0 0
    %776 = vmatpush1.bf16.msra.mxu0 %v675
    %777 = vmatprep.subr.bf16.mxu0 0
    %778 = vmatpush1.bf16.msra.mxu0 %v674
    %779 = vmatprep.subr.bf16.mxu0 0
    %780 = vmatpush2.bf16.msra.mxu0 %v689
    %781 = vmatprep.subr.bf16.mxu0 0
    %782 = vmatpush2.bf16.msra.mxu0 %v688
    %783 = vmatprep.subr.bf16.mxu0 0
    %784 = vmatpush2.bf16.msra.mxu0 %v687
    %785 = vmatprep.subr.bf16.mxu0 0
    %786 = vmatpush2.bf16.msra.mxu0 %v686
    %787 = vmatprep.subr.bf16.mxu0 0
    %788 = vmatpush2.bf16.msra.mxu0 %v685
    %789 = vmatprep.subr.bf16.mxu0 0
    %790 = vmatpush2.bf16.msra.mxu0 %v684
    %791 = vmatprep.subr.bf16.mxu0 0
    %792 = vmatpush2.bf16.msra.mxu0 %v683
    %793 = vmatprep.subr.bf16.mxu0 0
    %794 = vmatpush2.bf16.msra.mxu0 %v682
    %795 = vmatprep.mubr.bf16.mxu0 %v458
    %796 = vmatmul.mubr.bf16.gmra.mxu0 %v457
    %v797 = vpop.f32.mrf.mxu0
    %v798 = vadd.f32 %v757, %v797
    %v799 = vpop.f32.mrf.mxu0
    %v800 = vpop.f32.mrf.mxu0
    %v801 = vadd.f32 %v760, %v800
    %v802 = vpop.f32.mrf.mxu0
    %803 = vdwg.mxu0
    %804 = vst [vmem:[#allocation10] sm:$0xff] %v798
    %805 = vst [vmem:[#allocation10 + $0x8] sm:$0xff] %v801
    // Predicated region
    $region38: #{tpu_custom_call.1} parent=1 // pred_check
      _
    $region39: #{tpu_custom_call.1} parent=1 // pred_check_branch
      %807 = sbr.rel (0) target = $region41
    $region40: #{tpu_custom_call.1} parent=1 // pred_region
      %s809 = ssub.s32 256, 256
      %810 = vsyncadd [#allocation4], %s809
      %s811 = sshll.u32 [#allocation10], 4
      %s812 = int_to_ptr.vmem [resolvable:$true] %s811
      %817 = dma.vmem_to_hbm [thread:$0]  %s812, 256, %s5, [#allocation4], 128, 128, 8
    $region41: #{tpu_custom_call.1} parent=1 // pred_fallthru
      _
    // Predicated region
    $region42: #{tpu_custom_call.1} parent=1 // pred_check
      _
    $region43: #{tpu_custom_call.1} parent=1 // pred_check_branch
      %819 = sbr.rel (0) target = $region45
    $region44: #{tpu_custom_call.1} parent=1 // pred_region
      %820 = dma.done [#allocation4], 256
    $region45: #{tpu_custom_call.1} parent=1 // pred_fallthru
      _
    %821 = vsyncpa [#allocation3], 1
    %822 = vsyncpa [#allocation6], 1
    %823 = vsyncpa [#allocation9], 1
    %824 = vsyncpa [#allocation4], 1

</llo_original>
